<compile_context>
chip_gen: v7x
topology: tpu7x:2x2x1
jax: 0.10.0
libtpu: 0.0.40
codegen_flags: <defaults>
</compile_context>

<pallas_src>
import functools

import jax
import jax.numpy as jnp
from jax.experimental import pallas as pl
from jax.experimental.pallas import tpu as pltpu


def _round_up(x: int, m: int) -> int:
    return (x + m - 1) // m * m


def _vmem_capacity_bytes() -> int:
    try:
        return int(pltpu.get_tpu_info().vmem_capacity_bytes)
    except Exception:
        return 64 * 1024 * 1024  # conservative fallback (v7x per-core VMEM)


def _query_linear_kernel(x_ref, w_ref, b_ref, o_ref):
    # x_ref: [TILE_M, Kp]   w_ref: [Kp, TILE_N]   b_ref: [1, TILE_N]
    # o_ref: [TILE_M, TILE_N]
    # Weight already transposed/cast/padded at prepare time -> plain MXU
    # matmul with f32 accumulation and an f32 bias-add epilogue.
    y = jnp.dot(x_ref[...], w_ref[...], preferred_element_type=jnp.float32)
    o_ref[...] = (y + b_ref[...]).astype(o_ref.dtype)


def prepare_query_linear_params(weight, bias, *, weight_dtype=jnp.bfloat16):
    """One-time (model-load-time) relayout of the Linear parameters.

    weight: [E_out, E_in] (PyTorch Linear layout), bias: [E_out]
    Returns (w_t, bias2d) with w_t: [Kp, Ep] (transposed, cast, padded) and
    bias2d: [1, Ep] in f32.
    """
    weight = jnp.asarray(weight)
    bias = jnp.asarray(bias)
    e_out, e_in = weight.shape
    kp = _round_up(e_in, 128)
    ep = _round_up(e_out, 128)
    w_t = weight.T.astype(weight_dtype)                     # [E_in, E_out]
    w_t = jnp.pad(w_t, ((0, kp - e_in), (0, ep - e_out)))   # [Kp, Ep]
    b2 = bias.astype(jnp.float32).reshape(1, e_out)
    b2 = jnp.pad(b2, ((0, 0), (0, ep - e_out)))             # [1, Ep]
    return w_t, b2


@functools.partial(jax.jit, static_argnames=("max_tile_m", "max_tile_n"))
def query_transformer_linear(
    sentence_embedding,
    w_t,
    bias2d,
    *,
    max_tile_m: int = 256,
    max_tile_n: int = 1024,
):
    """Applies the QueryTransformer.linear projection via a Pallas kernel.

    sentence_embedding: [B, E]
    w_t:                [Kp, Ep]  (from prepare_query_linear_params)
    bias2d:             [1, Ep]   (f32, from prepare_query_linear_params)
    returns:            [B, E]    (same dtype as sentence_embedding)
    """
    B, E = sentence_embedding.shape
    Kp, Ep = w_t.shape
    out_dtype = sentence_embedding.dtype

    # Cast activations down to the weight's (lower) precision for the MXU;
    # accumulation stays f32 inside the kernel.
    x = sentence_embedding
    if jnp.dtype(w_t.dtype).itemsize < jnp.dtype(x.dtype).itemsize:
        x = x.astype(w_t.dtype)

    x_bytes = jnp.dtype(x.dtype).itemsize
    w_bytes = jnp.dtype(w_t.dtype).itemsize
    o_bytes = jnp.dtype(out_dtype).itemsize

    # Sublane alignment for the packed activation dtype (8 f32 / 16 bf16 rows).
    align_m = max(8, 32 // x_bytes)

    # ---- tile selection -----------------------------------------------------
    # Batch axis: pad-to-tile (never collapse to tiny tiles for awkward B).
    tile_m = min(_round_up(max_tile_m, align_m), _round_up(B, align_m))

    # N axis: largest multiple of 128 dividing Ep; when there is only one batch
    # tile, cap at Ep//2 so both v7x TensorCores get >= 1 parallel block.
    cap_n = max_tile_n
    if B <= tile_m and Ep >= 256:
        cap_n = min(cap_n, max(128, Ep // 2))
    tile_n = 128
    t = 128
    while t <= min(cap_n, Ep):
        if Ep % t == 0:
            tile_n = t
        t += 128

    # ---- fit double-buffered tiles into this chip's VMEM ---------------------
    vmem_cap = _vmem_capacity_bytes()
    budget = (vmem_cap * 3) // 4

    def vmem_needed(tm, tn):
        return 2 * (tm * Kp * x_bytes + Kp * tn * w_bytes + tn * 4
                    + tm * tn * o_bytes)

    while vmem_needed(tile_m, tile_n) > budget:
        smaller_n = [s for s in range(tile_n - 128, 127, -128) if Ep % s == 0]
        if smaller_n:
            tile_n = smaller_n[0]
        elif tile_m > align_m:
            tile_m = max(align_m, _round_up(tile_m // 2, align_m))
        else:
            # TODO(synk): for very large E add an "arbitrary" K grid axis with
            # an f32 VMEM accumulator instead of keeping the full contraction
            # dim resident.
            break

    Bp = _round_up(B, tile_m)
    m_blocks = Bp // tile_m
    n_blocks = Ep // tile_n

    if (Bp, Kp) != (B, E):
        x = jnp.pad(x, ((0, Bp - B), (0, Kp - E)))

    # ---- cost model (batch-innermost grid: weight streamed once) ------------
    cost = pl.CostEstimate(
        flops=2 * Bp * Kp * Ep,
        transcendentals=0,
        bytes_accessed=(n_blocks * Bp * Kp * x_bytes   # x re-read per N block
                        + Kp * Ep * w_bytes            # weight streamed once
                        + Ep * 4                       # bias
                        + Bp * Ep * o_bytes),          # output
    )

    vmem_limit = int(min(vmem_cap - (2 << 20),
                         max(32 * 1024 * 1024,
                             vmem_needed(tile_m, tile_n) + (4 << 20))))

    out = pl.pallas_call(
        _query_linear_kernel,
        out_shape=jax.ShapeDtypeStruct((Bp, Ep), out_dtype),
        # Batch axis innermost: the weight slab stays resident per N tile.
        grid=(n_blocks, m_blocks),
        in_specs=[
            # x tile follows the batch axis, full contraction dim resident.
            pl.BlockSpec((tile_m, Kp), lambda j, i: (i, 0)),
            # weight slab follows the E_out axis only (resident across i).
            pl.BlockSpec((Kp, tile_n), lambda j, i: (0, j)),
            # bias slab follows the E_out axis only.
            pl.BlockSpec((1, tile_n), lambda j, i: (0, j)),
        ],
        out_specs=pl.BlockSpec((tile_m, tile_n), lambda j, i: (i, j)),
        compiler_params=pltpu.CompilerParams(
            dimension_semantics=("parallel", "parallel"),
            vmem_limit_bytes=vmem_limit,
        ),
        cost_estimate=cost,
    )(x, w_t, bias2d)

    return out[:B, :E]


def query_transformer_forward(features, w_t, bias2d, **kwargs):
    """Mirrors QueryTransformer.forward: the features dict is updated with the
    projected 'sentence_embedding'.

    TODO(synk): `self.sentence_transformer(features)` (the external backbone)
    is represented by the precomputed 'sentence_embedding' entry in features.
    """
    output = features["sentence_embedding"]
    features.update(
        {"sentence_embedding": query_transformer_linear(output, w_t, bias2d, **kwargs)}
    )
    return features


if __name__ == "__main__":
    key = jax.random.PRNGKey(0)
    k_emb, k_w, k_b, k_emb2 = jax.random.split(key, 4)

    # Realistic small shapes: MiniLM-style embedding size, tiny batch.
    batch = 8
    embedding_size = 384

    sentence_embedding = jax.random.normal(
        k_emb, (batch, embedding_size), dtype=jnp.float32
    )
    bound = 1.0 / float(embedding_size) ** 0.5
    weight = jax.random.uniform(
        k_w, (embedding_size, embedding_size),
        minval=-bound, maxval=bound, dtype=jnp.float32,
    )
    bias = jax.random.uniform(
        k_b, (embedding_size,), minval=-bound, maxval=bound, dtype=jnp.float32
    )

    # f32 reference of torch.nn.Linear semantics.
    ref = (
        jnp.dot(sentence_embedding, weight.T, precision=jax.lax.Precision.HIGHEST)
        + bias
    )

    # ---- default path: bf16 weight (prepared once), f32 accumulation --------
    w_bf16, b_prep = prepare_query_linear_params(weight, bias)  # bf16 weights
    features = {"sentence_embedding": sentence_embedding}
    out_features = query_transformer_forward(features, w_bf16, b_prep)
    result = jax.block_until_ready(out_features["sentence_embedding"])
    assert result.shape == (batch, embedding_size)
    assert result.dtype == sentence_embedding.dtype
    assert jnp.allclose(result, ref, atol=5e-2, rtol=5e-2)

    # ---- full-f32 path (weights kept in f32) ---------------------------------
    w_f32, b_prep32 = prepare_query_linear_params(
        weight, bias, weight_dtype=jnp.float32
    )
    result_f32 = jax.block_until_ready(
        query_transformer_linear(sentence_embedding, w_f32, b_prep32)
    )
    assert result_f32.shape == (batch, embedding_size)
    assert jnp.allclose(result_f32, ref, atol=1e-4, rtol=1e-4)

    # ---- ragged / non-aligned shapes exercise the padding path --------------
    b2, e2 = 5, 32
    x2 = jax.random.normal(k_emb2, (b2, e2), dtype=jnp.float32)
    w2 = weight[:e2, :e2]
    bi2 = bias[:e2]
    ref2 = jnp.dot(x2, w2.T, precision=jax.lax.Precision.HIGHEST) + bi2
    w2p, b2p = prepare_query_linear_params(w2, bi2, weight_dtype=jnp.float32)
    result2 = jax.block_until_ready(query_transformer_linear(x2, w2p, b2p))
    assert result2.shape == (b2, e2)
    assert jnp.allclose(result2, ref2, atol=1e-4, rtol=1e-4)

    print("KERNEL_OK")
</pallas_src>

<mosaic_0001>
module attributes {stable_mosaic.version = 11 : i64} {
  func.func @_query_linear_kernel(%arg0: i32, %arg1: i32, %arg2: memref<16x384xbf16, #tpu.memory_space<vmem>>, %arg3: memref<384x128xbf16, #tpu.memory_space<vmem>>, %arg4: memref<1x128xf32, #tpu.memory_space<vmem>>, %arg5: memref<16x128xf32, #tpu.memory_space<vmem>>) attributes {dimension_semantics = [#tpu.dimension_semantics<parallel>, #tpu.dimension_semantics<parallel>], iteration_bounds = array<i64: 3, 1>, scalar_prefetch = 0 : i64, scratch_operands = 0 : i64, tpu.core_type = #tpu.core_type<tc>, window_params = [{transform_indices = @transform_0, window_bounds = array<i64: 16, 384>}, {transform_indices = @transform_1, window_bounds = array<i64: 384, 128>}, {transform_indices = @transform_2, window_bounds = array<i64: 1, 128>}, {transform_indices = @transform_3, window_bounds = array<i64: 16, 128>}]} {
    %c0 = arith.constant 0 : index
    %c0_0 = arith.constant 0 : index
    %0 = vector.load %arg2[%c0, %c0_0] : memref<16x384xbf16, #tpu.memory_space<vmem>>, vector<16x384xbf16>
    %c0_1 = arith.constant 0 : index
    %c0_2 = arith.constant 0 : index
    %1 = vector.load %arg3[%c0_1, %c0_2] : memref<384x128xbf16, #tpu.memory_space<vmem>>, vector<384x128xbf16>
    %cst = arith.constant dense<0.000000e+00> : vector<16x128xf32>
    %2 = tpu.matmul %0, %1, %cst {dimension_numbers = #tpu.dot_dimension_numbers<[1], [0], [0], [1], [0, 0, 1, 1], [], []>} : vector<16x384xbf16>, vector<384x128xbf16>, vector<16x128xf32> -> vector<16x128xf32>
    %c0_3 = arith.constant 0 : index
    %c0_4 = arith.constant 0 : index
    %3 = vector.load %arg4[%c0_3, %c0_4] : memref<1x128xf32, #tpu.memory_space<vmem>>, vector<1x128xf32>
    %4 = vector.broadcast %3 : vector<1x128xf32> to vector<16x128xf32>
    %5 = arith.addf %2, %4 : vector<16x128xf32>
    %c0_5 = arith.constant 0 : index
    %c0_6 = arith.constant 0 : index
    %6 = vector.load %arg5[%c0_5, %c0_6] : memref<16x128xf32, #tpu.memory_space<vmem>>, vector<16x128xf32>
    tpu.vector_store %arg5[%c0_5, %c0_6], %5 {strides = array<i32>} : memref<16x128xf32, #tpu.memory_space<vmem>>, vector<16x128xf32>,
    return
  }
  func.func @transform_0(%arg0: i32, %arg1: i32) -> (i32, i32) {
    %c0_i32 = arith.constant 0 : i32
    %c0_i32_0 = arith.constant 0 : i32
    return %arg1, %c0_i32 : i32, i32
  }
  func.func @transform_1(%arg0: i32, %arg1: i32) -> (i32, i32) {
    %c0_i32 = arith.constant 0 : i32
    %c0_i32_0 = arith.constant 0 : i32
    return %c0_i32, %arg0 : i32, i32
  }
  func.func @transform_2(%arg0: i32, %arg1: i32) -> (i32, i32) {
    %c0_i32 = arith.constant 0 : i32
    %c0_i32_0 = arith.constant 0 : i32
    return %c0_i32, %arg0 : i32, i32
  }
  func.func @transform_3(%arg0: i32, %arg1: i32) -> (i32, i32) {
    %c0_i32 = arith.constant 0 : i32
    return %arg1, %arg0 : i32, i32
  }
}

</mosaic_0001>

<llo_original>
// kernel: query_transformer_linear.1
$region0: #{query_transformer_linear.1}
  #allocation0 [shape = 'u32[]', space=smem, size = 0x4, offset = 0x4, fixed_abs, tag = 'smem constant byte address 0x4 - core index']
  #allocation1 [shape = 'u32[144,128]{1,0:T(1,128)}', space=vmem, size = 0x12000, scoped, tag = 'internal scratch']
  %s0 = inlined_call_operand.vmem [shape: bf16[16,384], index: 0, kind: input, shape index: {}]
  %s1 = inlined_call_operand.hbm [shape: bf16[384,384], index: 1, kind: input, shape index: {}]
  %s2 = inlined_call_operand.vmem [shape: f32[1,384], index: 2, kind: input, shape index: {}]
  %s3 = inlined_call_operand.vmem [shape: f32[16,384], index: 3, kind: output, shape index: {}]
  %s4 = sld [smem:[#allocation0]]
  $region83: #{query_transformer_linear.1} parent=0
    _
  %s6 = ssub.s32 1, %s4
  %s7 = scalar_select 0, %s6, %s4
  $region1: #{query_transformer_linear.1} parent=0
    #allocation2 [shape = 'u8[196608]{0}', space=vmem, size = 0x30000, scoped, tag = 'input window, operand 1']
    #allocation3 [shape = 's32[2]{0}', space=sflag, size = 0x8, scoped, tag = 'scoped memory for query_transformer_linear.1']
    #allocation4 [shape = 'u8[16384]{0}', space=vmem, size = 0x4000, scoped, tag = 'output window, operand 0']
    %8 = vsyncpa [#allocation3], 0
    %s9 = scalar_lea.sflag [#allocation3], 1
    %10 = vsyncpa %s9, 0
    loop: start=0, step=1, limit=5
    $region2: #{query_transformer_linear.1} parent=1 // loop_pre_header
      _
    $region3: #{query_transformer_linear.1} parent=1 // loop_header
      %s12 = sphi 0, %s16
      %p13 = scmp.ge.s32.totalorder %s12, 5
      %s19 = sphi 0, %s31
      %s20 = sphi 0, %s27
      %s21 = sphi 0, %s19
      %s22 = sphi 0, %s20
      %s23 = sphi 0, %s21
      %s24 = sphi 0, %s22
      %s34 = sphi 0, %s36
      %s37 = sphi 0, %s34
      %s38 = sphi 0, %s37
      %s54 = sphi 0, %s38
      %s60 = sphi 0, %s62
      %s63 = sphi 0, %s60
      %s64 = sphi 0, %s63
      %s80 = sphi 0, %s64
      %s86 = sphi 0, %s88
      %s89 = sphi 0, %s86
      %s90 = sphi 0, %s89
      %s106 = sphi 0, %s90
      %s114 = sphi 0, %s116
      %s117 = sphi 0, %s114
      %s118 = sphi 0, %s117
      %s134 = sphi 0, %s118
    $region4: #{query_transformer_linear.1} parent=1 // loop_header_branch
      %15 = sbr.rel (%p13) target = $region8
    $region5: #{query_transformer_linear.1} parent=1 // loop_body
      %s17 = ssub.s32 %s12, 1
      %s18 = ssub.s32 %s12, 2
      %s25 = sadd.s32 1, %s20
      %p26 = scmp.ge.s32.totalorder %s25, 1
      %s27 = scalar_select %p26, 0, %s25
      %s28 = sadd.s32 1, %s19
      %s29 = scalar_select %p26, %s28, %s19
      %p30 = scmp.ge.s32.totalorder %s29, 3
      %s31 = scalar_select %p30, 0, %s29
      %s32 = ssub.s32 %s20, %s27
      %p33 = scmp.eq.s32.totalorder %s32, 0
      %s35 = sadd.s32 %s34, 1
      %s36 = scalar_select %p33, %s34, %s35
      %p39 = pneg %p33
      %p40 = scmp.eq.s32.totalorder %s12, 2
      %p41 = por %p39, %p40
      %p42 = scmp.ne.s32.totalorder %s34, %s37
      %p43 = scmp.eq.s32.totalorder %s12, 0
      %p44 = por %p42, %p43
      %p45 = scmp.ne.s32.totalorder %s34, %s37
      %p46 = scmp.eq.s32.totalorder %s17, 2
      %p47 = por %p45, %p46
      %p48 = scmp.ne.s32.totalorder %s37, %s38
      %p49 = scmp.eq.s32.totalorder %s17, 0
      %p50 = por %p48, %p49
      %p51 = scmp.ne.s32.totalorder %s37, %s38
      %p52 = scmp.eq.s32.totalorder %s18, 2
      %p53 = por %p51, %p52
      %p55 = scmp.ne.s32.totalorder %s38, %s54
      %p56 = scmp.eq.s32.totalorder %s18, 0
      %p57 = por %p55, %p56
      %s58 = ssub.s32 %s19, %s31
      %p59 = scmp.eq.s32.totalorder %s58, 0
      %s61 = sadd.s32 %s60, 1
      %s62 = scalar_select %p59, %s60, %s61
      %p65 = pneg %p59
      %p66 = scmp.eq.s32.totalorder %s12, 2
      %p67 = por %p65, %p66
      %p68 = scmp.ne.s32.totalorder %s60, %s63
      %p69 = scmp.eq.s32.totalorder %s12, 0
      %p70 = por %p68, %p69
      %p71 = scmp.ne.s32.totalorder %s60, %s63
      %p72 = scmp.eq.s32.totalorder %s17, 2
      %p73 = por %p71, %p72
      %p74 = scmp.ne.s32.totalorder %s63, %s64
      %p75 = scmp.eq.s32.totalorder %s17, 0
      %p76 = por %p74, %p75
      %p77 = scmp.ne.s32.totalorder %s63, %s64
      %p78 = scmp.eq.s32.totalorder %s18, 2
      %p79 = por %p77, %p78
      %p81 = scmp.ne.s32.totalorder %s64, %s80
      %p82 = scmp.eq.s32.totalorder %s18, 0
      %p83 = por %p81, %p82
      %s84 = ssub.s32 %s19, %s31
      %p85 = scmp.eq.s32.totalorder %s84, 0
      %s87 = sadd.s32 %s86, 1
      %s88 = scalar_select %p85, %s86, %s87
      %p91 = pneg %p85
      %p92 = scmp.eq.s32.totalorder %s12, 2
      %p93 = por %p91, %p92
      %p94 = scmp.ne.s32.totalorder %s86, %s89
      %p95 = scmp.eq.s32.totalorder %s12, 0
      %p96 = por %p94, %p95
      %p97 = scmp.ne.s32.totalorder %s86, %s89
      %p98 = scmp.eq.s32.totalorder %s17, 2
      %p99 = por %p97, %p98
      %p100 = scmp.ne.s32.totalorder %s89, %s90
      %p101 = scmp.eq.s32.totalorder %s17, 0
      %p102 = por %p100, %p101
      %p103 = scmp.ne.s32.totalorder %s89, %s90
      %p104 = scmp.eq.s32.totalorder %s18, 2
      %p105 = por %p103, %p104
      %p107 = scmp.ne.s32.totalorder %s90, %s106
      %p108 = scmp.eq.s32.totalorder %s18, 0
      %p109 = por %p107, %p108
      %s110 = ssub.s32 %s20, %s27
      %s111 = ssub.s32 %s19, %s31
      %s112 = sor.u32 %s110, %s111
      %p113 = scmp.eq.s32.totalorder %s112, 0
      %s115 = sadd.s32 %s114, 1
      %s116 = scalar_select %p113, %s114, %s115
      %p119 = pneg %p113
      %p120 = scmp.eq.s32.totalorder %s12, 2
      %p121 = por %p119, %p120
      %p122 = scmp.ne.s32.totalorder %s114, %s117
      %p123 = scmp.eq.s32.totalorder %s12, 0
      %p124 = por %p122, %p123
      %p125 = scmp.ne.s32.totalorder %s114, %s117
      %p126 = scmp.eq.s32.totalorder %s17, 2
      %p127 = por %p125, %p126
      %p128 = scmp.ne.s32.totalorder %s117, %s118
      %p129 = scmp.eq.s32.totalorder %s17, 0
      %p130 = por %p128, %p129
      %p131 = scmp.ne.s32.totalorder %s117, %s118
      %p132 = scmp.eq.s32.totalorder %s18, 2
      %p133 = por %p131, %p132
      %p135 = scmp.ne.s32.totalorder %s118, %s134
      %p136 = scmp.eq.s32.totalorder %s18, 0
      %p137 = por %p135, %p136
      %p138 = scmp.le.s32.totalorder 1, %s12
      %p139 = scmp.lt.s32.totalorder %s12, 4
      %p140 = pnand %p138, %p139
      %p141 = pneg %p140
      // Predicated region
      $region9: #{query_transformer_linear.1} parent=5 // pred_check
        _
      $region10: #{query_transformer_linear.1} parent=5 // pred_check_branch
        %143 = sbr.rel (%p140) target = $region12
      $region11: #{query_transformer_linear.1} parent=5 // pred_region
        %s144 = ssub.s32 %s12, 1
        // Predicated region
        $region13: #{query_transformer_linear.1} parent=11 // pred_check
          %p145 = pneg %p50
        $region14: #{query_transformer_linear.1} parent=11 // pred_check_branch
          %147 = sbr.rel (%p145) target = $region16
        $region15: #{query_transformer_linear.1} parent=11 // pred_region
          %s148 = smul.u32 2, %s22
          %p149 = scmp.lt.s32.totalorder %s148, 1
          %s150 = scalar_select %p149, %s148, 1
          %s151 = smul.addr %s150, 3
          %s152 = smul.addr %s151, 4
          %s153 = scalar_lea.vmem %s0, %s152
          %s154 = smul.u32 2, %s22
        $region16: #{query_transformer_linear.1} parent=11 // pred_fallthru
          _
      $region12: #{query_transformer_linear.1} parent=5 // pred_fallthru
        _
      %p155 = scmp.lt.s32.totalorder %s12, 3
      // Predicated region
      $region17: #{query_transformer_linear.1} parent=5 // pred_check
        %p156 = pneg %p155
      $region18: #{query_transformer_linear.1} parent=5 // pred_check_branch
        %158 = sbr.rel (%p156) target = $region20
      $region19: #{query_transformer_linear.1} parent=5 // pred_region
        // Predicated region
        $region21: #{query_transformer_linear.1} parent=19 // pred_check
          %p159 = pneg %p70
        $region22: #{query_transformer_linear.1} parent=19 // pred_check_branch
          %161 = sbr.rel (%p159) target = $region24
        $region23: #{query_transformer_linear.1} parent=19 // pred_region
          %s162 = sand.u32 %s60, 1
          %s163 = scalar_lea.sflag [#allocation3], %s162
          %s164 = sand.u32 %s60, 1
          %s165 = smul.addr %s164, 192
          %s166 = scalar_lea.vmem [#allocation2], %s165
          %s168 = ssub.s32 3072, 3072
          %169 = vsyncadd %s163, %s168
          %s170 = smul.addr %s19, 64
          %s171 = scalar_lea.hbm %s1, %s170
          %s172 = sshll.u32 %s166, 4
          %s173 = int_to_ptr.vmem [resolvable:$true] %s172
          %178 = dma.hbm_to_vmem [thread:$0]  %s171, 3072, %s173, %s163, 192, 64, 4
        $region24: #{query_transformer_linear.1} parent=19 // pred_fallthru
          _
        // Predicated region
        $region25: #{query_transformer_linear.1} parent=19 // pred_check
          %p179 = pneg %p96
        $region26: #{query_transformer_linear.1} parent=19 // pred_check_branch
          %181 = sbr.rel (%p179) target = $region28
        $region27: #{query_transformer_linear.1} parent=19 // pred_region
          %p182 = scmp.lt.s32.totalorder %s19, 2
          %s183 = scalar_select %p182, %s19, 2
          %s184 = scalar_lea.vmem %s2, %s183
        $region28: #{query_transformer_linear.1} parent=19 // pred_fallthru
          _
      $region20: #{query_transformer_linear.1} parent=5 // pred_fallthru
        _
      %p185 = scmp.le.s32.totalorder 1, %s12
      %p186 = scmp.lt.s32.totalorder %s12, 4
      %p187 = pnand %p185, %p186
      %p188 = pneg %p187
      // Predicated region
      $region29: #{query_transformer_linear.1} parent=5 // pred_check
        _
      $region30: #{query_transformer_linear.1} parent=5 // pred_check_branch
        %190 = sbr.rel (%p187) target = $region32
      $region31: #{query_transformer_linear.1} parent=5 // pred_region
        %s191 = ssub.s32 %s12, 1
        %s192 = sand.u32 %s63, 1
        %s193 = scalar_lea.sflag [#allocation3], %s192
        %s194 = sand.u32 %s63, 1
        %s195 = smul.addr %s194, 192
        %s196 = scalar_lea.vmem [#allocation2], %s195
        // Predicated region
        $region33: #{query_transformer_linear.1} parent=31 // pred_check
          %p197 = pneg %p76
        $region34: #{query_transformer_linear.1} parent=31 // pred_check_branch
          %199 = sbr.rel (%p197) target = $region36
        $region35: #{query_transformer_linear.1} parent=31 // pred_region
          %200 = dma.done %s193, 3072
        $region36: #{query_transformer_linear.1} parent=31 // pred_fallthru
          _
        %s201 = smul.u32 2, %s22
        %p202 = scmp.lt.s32.totalorder %s201, 1
        %s203 = scalar_select %p202, %s201, 1
        %s204 = smul.addr %s203, 3
        %s205 = smul.addr %s204, 4
        %s206 = scalar_lea.vmem %s0, %s205
        %p207 = pneg %p50
        %p208 = pneg %p47
        %s209 = sand.u32 %s63, 1
        %s210 = scalar_lea.sflag [#allocation3], %s209
        %s211 = sand.u32 %s63, 1
        %s212 = smul.addr %s211, 192
        %s213 = scalar_lea.vmem [#allocation2], %s212
        %p214 = pneg %p76
        %p215 = pneg %p73
        %p216 = scmp.lt.s32.totalorder %s21, 2
        %s217 = scalar_select %p216, %s21, 2
        %s218 = scalar_lea.vmem %s2, %s217
        %p219 = pneg %p102
        %p220 = pneg %p99
        %p221 = pneg %p130
        %p222 = pneg %p127
        %s223 = sand.u32 %s117, 1
        %s224 = sand.u32 %s117, 1
        %s225 = smul.addr %s224, 16
        %s226 = scalar_lea.vmem [#allocation4], %s225
        %s227 = smul.u32 2, %s22
        %p228 = scmp.lt.s32.totalorder %s227, 1
        %s229 = scalar_select %p228, %s227, 1
        %s230 = smul.addr %s229, 3
        %s231 = smul.addr %s230, 4
        %s232 = scalar_lea.vmem %s0, %s231
        %s233 = smul.u32 2, %s22
        %p234 = scmp.lt.s32.totalorder %s21, 2
        %s235 = scalar_select %p234, %s21, 2
        %s236 = scalar_lea.vmem %s2, %s235
        %s237 = smul.u32 2, %s22
        %v239 = vld [vmem:[%s232] sm:$0xff]
        %v240 = vld [vmem:[%s232 + $0x8] sm:$0xf]
        %v241 = vld [vmem:[%s232 + $0xc] sm:$0xff]
        %v242 = vld [vmem:[%s232 + $0x14] sm:$0xf]
        %v243 = vld [vmem:[%s196] sm:$0xf]
        %v244 = vld [vmem:[%s196 + $0x4] sm:$0xf]
        %v245 = vld [vmem:[%s196 + $0x8] sm:$0xf]
        %v246 = vld [vmem:[%s196 + $0xc] sm:$0xf]
        %v247 = vld [vmem:[%s196 + $0x10] sm:$0xf]
        %v248 = vld [vmem:[%s196 + $0x14] sm:$0xf]
        %v249 = vld [vmem:[%s196 + $0x18] sm:$0xf]
        %v250 = vld [vmem:[%s196 + $0x1c] sm:$0xf]
        %v251 = vld [vmem:[%s196 + $0x20] sm:$0xf]
        %v252 = vld [vmem:[%s196 + $0x24] sm:$0xf]
        %v253 = vld [vmem:[%s196 + $0x28] sm:$0xf]
        %v254 = vld [vmem:[%s196 + $0x2c] sm:$0xf]
        %v255 = vld [vmem:[%s196 + $0x30] sm:$0xf]
        %v256 = vld [vmem:[%s196 + $0x34] sm:$0xf]
        %v257 = vld [vmem:[%s196 + $0x38] sm:$0xf]
        %v258 = vld [vmem:[%s196 + $0x3c] sm:$0xf]
        %v259 = vld [vmem:[%s196 + $0x40] sm:$0xf]
        %v260 = vld [vmem:[%s196 + $0x44] sm:$0xf]
        %v261 = vld [vmem:[%s196 + $0x48] sm:$0xf]
        %v262 = vld [vmem:[%s196 + $0x4c] sm:$0xf]
        %v263 = vld [vmem:[%s196 + $0x50] sm:$0xf]
        %v264 = vld [vmem:[%s196 + $0x54] sm:$0xf]
        %v265 = vld [vmem:[%s196 + $0x58] sm:$0xf]
        %v266 = vld [vmem:[%s196 + $0x5c] sm:$0xf]
        %v267 = vld [vmem:[%s196 + $0x60] sm:$0xf]
        %v268 = vld [vmem:[%s196 + $0x64] sm:$0xf]
        %v269 = vld [vmem:[%s196 + $0x68] sm:$0xf]
        %v270 = vld [vmem:[%s196 + $0x6c] sm:$0xf]
        %v271 = vld [vmem:[%s196 + $0x70] sm:$0xf]
        %v272 = vld [vmem:[%s196 + $0x74] sm:$0xf]
        %v273 = vld [vmem:[%s196 + $0x78] sm:$0xf]
        %v274 = vld [vmem:[%s196 + $0x7c] sm:$0xf]
        %v275 = vld [vmem:[%s196 + $0x80] sm:$0xf]
        %v276 = vld [vmem:[%s196 + $0x84] sm:$0xf]
        %v277 = vld [vmem:[%s196 + $0x88] sm:$0xf]
        %v278 = vld [vmem:[%s196 + $0x8c] sm:$0xf]
        %v279 = vld [vmem:[%s196 + $0x90] sm:$0xf]
        %v280 = vld [vmem:[%s196 + $0x94] sm:$0xf]
        %v281 = vld [vmem:[%s196 + $0x98] sm:$0xf]
        %v282 = vld [vmem:[%s196 + $0x9c] sm:$0xf]
        %v283 = vld [vmem:[%s196 + $0xa0] sm:$0xf]
        %v284 = vld [vmem:[%s196 + $0xa4] sm:$0xf]
        %v285 = vld [vmem:[%s196 + $0xa8] sm:$0xf]
        %v286 = vld [vmem:[%s196 + $0xac] sm:$0xf]
        %v287 = vld [vmem:[%s196 + $0xb0] sm:$0xf]
        %v288 = vld [vmem:[%s196 + $0xb4] sm:$0xf]
        %v289 = vld [vmem:[%s196 + $0xb8] sm:$0xf]
        %v290 = vld [vmem:[%s196 + $0xbc] sm:$0xf]
        %v291 = vld [vmem:[%s236] sm:$0x1]
        %v293 = vlaneseq
        %v294 = vshrl.u32 %v293, 7
        %v295 = vsub.s32 0, %v294
        %v296 = vrot.slane %v291, %v295
        %v302 = vunpack.c.l.b16 %v239
        %v303 = vunpack.c.h.b16 %v239
        %v304 = vunpack.c.l.b16 %v240
        %v305 = vunpack.c.l.b16 %v241
        %v306 = vunpack.c.h.b16 %v241
        %v307 = vunpack.c.l.b16 %v242
        %v308 = vpack.c.b16 %v305, %v302
        %v309 = vpack.c.b16 %v306, %v303
        %v310 = vpack.c.b16 %v307, %v304
        %v362 = vunpack.c.l.b16 %v243
        %v363 = vunpack.c.l.b16 %v244
        %v364 = vunpack.c.l.b16 %v245
        %v365 = vunpack.c.l.b16 %v246
        %v366 = vunpack.c.l.b16 %v247
        %v367 = vunpack.c.l.b16 %v248
        %v368 = vunpack.c.l.b16 %v249
        %v369 = vunpack.c.l.b16 %v250
        %v370 = vunpack.c.l.b16 %v251
        %v371 = vunpack.c.l.b16 %v252
        %v372 = vunpack.c.l.b16 %v253
        %v373 = vunpack.c.l.b16 %v254
        %v374 = vunpack.c.l.b16 %v255
        %v375 = vunpack.c.l.b16 %v256
        %v376 = vunpack.c.l.b16 %v257
        %v377 = vunpack.c.l.b16 %v258
        %v378 = vunpack.c.l.b16 %v259
        %v379 = vunpack.c.l.b16 %v260
        %v380 = vunpack.c.l.b16 %v261
        %v381 = vunpack.c.l.b16 %v262
        %v382 = vunpack.c.l.b16 %v263
        %v383 = vunpack.c.l.b16 %v264
        %v384 = vunpack.c.l.b16 %v265
        %v385 = vunpack.c.l.b16 %v266
        %v386 = vunpack.c.l.b16 %v267
        %v387 = vunpack.c.l.b16 %v268
        %v388 = vunpack.c.l.b16 %v269
        %v389 = vunpack.c.l.b16 %v270
        %v390 = vunpack.c.l.b16 %v271
        %v391 = vunpack.c.l.b16 %v272
        %v392 = vunpack.c.l.b16 %v273
        %v393 = vunpack.c.l.b16 %v274
        %v394 = vunpack.c.l.b16 %v275
        %v395 = vunpack.c.l.b16 %v276
        %v396 = vunpack.c.l.b16 %v277
        %v397 = vunpack.c.l.b16 %v278
        %v398 = vunpack.c.l.b16 %v279
        %v399 = vunpack.c.l.b16 %v280
        %v400 = vunpack.c.l.b16 %v281
        %v401 = vunpack.c.l.b16 %v282
        %v402 = vunpack.c.l.b16 %v283
        %v403 = vunpack.c.l.b16 %v284
        %v404 = vunpack.c.l.b16 %v285
        %v405 = vunpack.c.l.b16 %v286
        %v406 = vunpack.c.l.b16 %v287
        %v407 = vunpack.c.l.b16 %v288
        %v408 = vunpack.c.l.b16 %v289
        %v409 = vunpack.c.l.b16 %v290
        %v410 = vpack.c.b16 %v363, %v362
        %v411 = vpack.c.b16 %v365, %v364
        %v412 = vpack.c.b16 %v367, %v366
        %v413 = vpack.c.b16 %v369, %v368
        %v414 = vpack.c.b16 %v371, %v370
        %v415 = vpack.c.b16 %v373, %v372
        %v416 = vpack.c.b16 %v375, %v374
        %v417 = vpack.c.b16 %v377, %v376
        %v418 = vpack.c.b16 %v379, %v378
        %v419 = vpack.c.b16 %v381, %v380
        %v420 = vpack.c.b16 %v383, %v382
        %v421 = vpack.c.b16 %v385, %v384
        %v422 = vpack.c.b16 %v387, %v386
        %v423 = vpack.c.b16 %v389, %v388
        %v424 = vpack.c.b16 %v391, %v390
        %v425 = vpack.c.b16 %v393, %v392
        %v426 = vpack.c.b16 %v395, %v394
        %v427 = vpack.c.b16 %v397, %v396
        %v428 = vpack.c.b16 %v399, %v398
        %v429 = vpack.c.b16 %v401, %v400
        %v430 = vpack.c.b16 %v403, %v402
        %v431 = vpack.c.b16 %v405, %v404
        %v432 = vpack.c.b16 %v407, %v406
        %v433 = vpack.c.b16 %v409, %v408
        %458 = vmatprep.subr.bf16.mxu0 0
        %459 = vmatpush1.bf16.msra.mxu0 %v410
        %460 = vmatprep.subr.bf16.mxu0 0
        %461 = vmatpush1.bf16.msra.mxu0 %v411
        %462 = vmatprep.subr.bf16.mxu0 0
        %463 = vmatpush1.bf16.msra.mxu0 %v412
        %464 = vmatprep.subr.bf16.mxu0 0
        %465 = vmatpush1.bf16.msra.mxu0 %v413
        %466 = vmatprep.subr.bf16.mxu0 0
        %467 = vmatpush1.bf16.msra.mxu0 %v414
        %468 = vmatprep.subr.bf16.mxu0 0
        %469 = vmatpush1.bf16.msra.mxu0 %v415
        %470 = vmatprep.subr.bf16.mxu0 0
        %471 = vmatpush1.bf16.msra.mxu0 %v416
        %472 = vmatprep.subr.bf16.mxu0 0
        %473 = vmatpush1.bf16.msra.mxu0 %v417
        %474 = vmatprep.subr.bf16.mxu0 0
        %475 = vmatpush1.bf16.msra.mxu0 %v418
        %476 = vmatprep.subr.bf16.mxu0 0
        %477 = vmatpush1.bf16.msra.mxu0 %v419
        %478 = vmatprep.subr.bf16.mxu0 0
        %479 = vmatpush1.bf16.msra.mxu0 %v420
        %480 = vmatprep.subr.bf16.mxu0 0
        %481 = vmatpush1.bf16.msra.mxu0 %v421
        %482 = vmatprep.subr.bf16.mxu0 0
        %483 = vmatpush1.bf16.msra.mxu0 %v422
        %484 = vmatprep.subr.bf16.mxu0 0
        %485 = vmatpush1.bf16.msra.mxu0 %v423
        %486 = vmatprep.subr.bf16.mxu0 0
        %487 = vmatpush1.bf16.msra.mxu0 %v424
        %488 = vmatprep.subr.bf16.mxu0 0
        %489 = vmatpush1.bf16.msra.mxu0 %v425
        %490 = vmatprep.mubr.bf16.mxu0 %v309
        %491 = vmatmul.mubr.bf16.gmra.mrb[0].mxu0 %v308
        %v492 = vpop.f32.mrb[0].mxu0
        %v493 = vadd.f32 %v296, %v492
        %v494 = vpop.f32.mrb[0].mxu0
        %v495 = vpop.f32.mrb[0].mxu0
        %v496 = vadd.f32 %v296, %v495
        %v497 = vpop.f32.mrb[0].mxu0
        %498 = vdwg.mxu0
        %499 = vmatprep.subr.bf16.mxu0 0
        %500 = vmatpush1.bf16.msra.mxu0 %v426
        %501 = vmatprep.subr.bf16.mxu0 0
        %502 = vmatpush1.bf16.msra.mxu0 %v427
        %503 = vmatprep.subr.bf16.mxu0 0
        %504 = vmatpush1.bf16.msra.mxu0 %v428
        %505 = vmatprep.subr.bf16.mxu0 0
        %506 = vmatpush1.bf16.msra.mxu0 %v429
        %507 = vmatprep.subr.bf16.mxu0 0
        %508 = vmatpush1.bf16.msra.mxu0 %v430
        %509 = vmatprep.subr.bf16.mxu0 0
        %510 = vmatpush1.bf16.msra.mxu0 %v431
        %511 = vmatprep.subr.bf16.mxu0 0
        %512 = vmatpush1.bf16.msra.mxu0 %v432
        %513 = vmatprep.subr.bf16.mxu0 0
        %514 = vmatpush1.bf16.msra.mxu0 %v433
        %515 = vmatprep.subr.bf16.mxu0 0
        %516 = vmatpush1.bf16.msra.mxu0 0
        %517 = vmatprep.subr.bf16.mxu0 0
        %518 = vmatpush1.bf16.msra.mxu0 0
        %519 = vmatprep.subr.bf16.mxu0 0
        %520 = vmatpush1.bf16.msra.mxu0 0
        %521 = vmatprep.subr.bf16.mxu0 0
        %522 = vmatpush1.bf16.msra.mxu0 0
        %523 = vmatprep.subr.bf16.mxu0 0
        %524 = vmatpush1.bf16.msra.mxu0 0
        %525 = vmatprep.subr.bf16.mxu0 0
        %526 = vmatpush1.bf16.msra.mxu0 0
        %527 = vmatprep.subr.bf16.mxu0 0
        %528 = vmatpush1.bf16.msra.mxu0 0
        %529 = vmatprep.subr.bf16.mxu0 0
        %530 = vmatpush1.bf16.msra.mxu0 0
        %531 = vmatprep.mubr.bf16.mxu0 0
        %532 = vmatmul.mubr.bf16.gmra.mrb[0].mxu0 %v310
        %v533 = vpop.f32.mrb[0].mxu0
        %v534 = vadd.f32 %v493, %v533
        %v535 = vpop.f32.mrb[0].mxu0
        %v536 = vpop.f32.mrb[0].mxu0
        %v537 = vadd.f32 %v496, %v536
        %v538 = vpop.f32.mrb[0].mxu0
        %539 = vdwg.mxu0
        %540 = vst [vmem:[%s226] sm:$0xff] %v534
        %541 = vst [vmem:[%s226 + $0x8] sm:$0xff] %v537
        %s542 = sand.u32 %s117, 1
        %s543 = sand.u32 %s117, 1
        %s544 = smul.addr %s543, 16
        %s545 = scalar_lea.vmem [#allocation4], %s544
        // Predicated region
        $region37: #{query_transformer_linear.1} parent=31 // pred_check
          %p546 = pneg %p127
        $region38: #{query_transformer_linear.1} parent=31 // pred_check_branch
          %548 = sbr.rel (%p546) target = $region40
        $region39: #{query_transformer_linear.1} parent=31 // pred_region
          %s549 = smul.u32 2, %s22
          %s550 = smul.addr %s549, 3
          %s551 = sadd.s32 %s21, %s550
          %s552 = smul.addr %s551, 8
          %s553 = scalar_lea.vmem %s3, %s552
          // Predicated region
          $region41: #{query_transformer_linear.1} parent=39 // pred_check
            _
          $region42: #{query_transformer_linear.1} parent=39 // pred_check_branch
            %555 = sbr.rel (0) target = $region44
          $region43: #{query_transformer_linear.1} parent=39 // pred_region
            // Predicated region
            $region45: #{query_transformer_linear.1} parent=43 // pred_check
              _
            $region46: #{query_transformer_linear.1} parent=43 // pred_check_branch
              %557 = sbr.rel (0) target = $region48
            $region47: #{query_transformer_linear.1} parent=43 // pred_region
              // Predicated region
              $region60: #{query_transformer_linear.1} parent=47 // pred_check
                _
              $region61: #{query_transformer_linear.1} parent=47 // pred_check_branch
                %574 = sbr.rel (0) target = $region63
              $region62: #{query_transformer_linear.1} parent=47 // pred_region
                loop: start=0, step=1, limit=1
                $region64: #{query_transformer_linear.1} parent=62 // loop_pre_header
                  _
                $region65: #{query_transformer_linear.1} parent=62 // loop_header
                  %s576 = sphi 0, %s580
                  %p577 = scmp.ge.s32.totalorder %s576, 1
                  %s581 = sphi %s545, %s545
                  %s582 = sphi %s553, %s553
                $region66: #{query_transformer_linear.1} parent=62 // loop_header_branch
                  %579 = sbr.rel (%p577) target = $region70
                $region67: #{query_transformer_linear.1} parent=62 // loop_body
                  %v583 = vld [vmem:[%s581] sm:$0xff]
                  %584 = vst [vmem:[%s582] sm:$0xff] %v583
                  %v585 = vld [vmem:[%s581 + $0x8] sm:$0xff]
                  %586 = vst [vmem:[%s582 + $0x18] sm:$0xff] %v585
                $region68: #{query_transformer_linear.1} parent=62 // loop_footer
                  %s580 = sadd.s32 1, %s576
                $region69: #{query_transformer_linear.1} parent=62 // loop_footer_branch
                  %575 = sbr.rel target = $region65
                $region70: #{query_transformer_linear.1} parent=62 // loop_exit
                  _
              $region63: #{query_transformer_linear.1} parent=47 // pred_fallthru
                _
              // Predicated region
              $region71: #{query_transformer_linear.1} parent=47 // pred_check
                _
              $region72: #{query_transformer_linear.1} parent=47 // pred_check_branch
                %588 = sbr.rel target = $region74
              $region73: #{query_transformer_linear.1} parent=47 // pred_region
                _
              $region74: #{query_transformer_linear.1} parent=47 // pred_fallthru
                _
            $region48: #{query_transformer_linear.1} parent=43 // pred_fallthru
              _
            // Predicated region
            $region49: #{query_transformer_linear.1} parent=43 // pred_check
              _
            $region50: #{query_transformer_linear.1} parent=43 // pred_check_branch
              %559 = sbr.rel target = $region52
            $region51: #{query_transformer_linear.1} parent=43 // pred_region
              loop: start=0, step=1, limit=1
              $region53: #{query_transformer_linear.1} parent=51 // loop_pre_header
                _
              $region54: #{query_transformer_linear.1} parent=51 // loop_header
                %s562 = sphi 0, %s566
                %p563 = scmp.ge.s32.totalorder %s562, 1
                %s567 = sphi %s545, %s545
                %s568 = sphi %s553, %s553
              $region55: #{query_transformer_linear.1} parent=51 // loop_header_branch
                %565 = sbr.rel (%p563) target = $region59
              $region56: #{query_transformer_linear.1} parent=51 // loop_body
                %v569 = vld [vmem:[%s567] sm:$0xff]
                %570 = vst [vmem:[%s568] sm:$0xff] %v569
                %v571 = vld [vmem:[%s567 + $0x8] sm:$0xff]
                %572 = vst [vmem:[%s568 + $0x18] sm:$0xff] %v571
              $region57: #{query_transformer_linear.1} parent=51 // loop_footer
                %s566 = sadd.s32 1, %s562
              $region58: #{query_transformer_linear.1} parent=51 // loop_footer_branch
                %561 = sbr.rel target = $region54
              $region59: #{query_transformer_linear.1} parent=51 // loop_exit
                _
            $region52: #{query_transformer_linear.1} parent=43 // pred_fallthru
              _
          $region44: #{query_transformer_linear.1} parent=39 // pred_fallthru
            _
          %589 = vnop
        $region40: #{query_transformer_linear.1} parent=31 // pred_fallthru
          _
      $region32: #{query_transformer_linear.1} parent=5 // pred_fallthru
        _
      %p590 = scmp.le.s32.totalorder 2, %s12
      // Predicated region
      $region75: #{query_transformer_linear.1} parent=5 // pred_check
        %p591 = pneg %p590
      $region76: #{query_transformer_linear.1} parent=5 // pred_check_branch
        %593 = sbr.rel (%p591) target = $region78
      $region77: #{query_transformer_linear.1} parent=5 // pred_region
        %s594 = ssub.s32 %s12, 2
        // Predicated region
        $region79: #{query_transformer_linear.1} parent=77 // pred_check
          %p595 = pneg %p133
        $region80: #{query_transformer_linear.1} parent=77 // pred_check_branch
          %597 = sbr.rel (%p595) target = $region82
        $region81: #{query_transformer_linear.1} parent=77 // pred_region
          %s598 = sand.u32 %s118, 1
          %s599 = sand.u32 %s118, 1
          %s600 = smul.addr %s599, 16
          %s601 = scalar_lea.vmem [#allocation4], %s600
        $region82: #{query_transformer_linear.1} parent=77 // pred_fallthru
          _
      $region78: #{query_transformer_linear.1} parent=5 // pred_fallthru
        _
    $region6: #{query_transformer_linear.1} parent=1 // loop_footer
      %s16 = sadd.s32 1, %s12
    $region7: #{query_transformer_linear.1} parent=1 // loop_footer_branch
      %11 = sbr.rel target = $region3
    $region8: #{query_transformer_linear.1} parent=1 // loop_exit
      _
    %602 = vsyncpa [#allocation3], 1
    %s603 = scalar_lea.sflag [#allocation3], 1
    %604 = vsyncpa %s603, 1

</llo_original>
